<compile_context>
chip_gen: v7x
topology: tpu7x:2x2x1
jax: 0.10.0
libtpu: 0.0.40
codegen_flags: <defaults>
</compile_context>

<pallas_src>
import functools

import jax
import jax.numpy as jnp
from jax.experimental import pallas as pl
from jax.experimental.pallas import tpu as pltpu


def _graphs_kernel(xT_ref, w_ref, m0_ref, d_ref, out_ref, *,
                   num_nodes_p, num_jumps):
    """One (graph, batch-tile) program.

    xT_ref : (F_pad, TB)      bf16  -- x transposed, constant-1 bias column at F
    w_ref  : (N_pad, F_pad)   bf16  -- Linear4D weight, bias folded into col F
    m0_ref : (NL_pad, N_pad)  f32   -- softmax(M_left, dim over NL), padded
    d_ref  : (NL_pad, N_pad)  f32   -- softmax(M_right) - softmax(M_left)
    out_ref: (L_pad, TB)
    """
    Np = num_nodes_p
    TB = xT_ref.shape[1]
    Lp = out_ref.shape[0]

    # nodes = Sigmoid(Linear4D(x)) in transposed layout:
    #   logits_t[n, b] = sum_f W[n, f] * x[b, f] + bias[n]
    # bf16 operands, f32 MXU accumulation; no in-kernel transpose needed.
    logits = jnp.dot(w_ref[...], xT_ref[...],
                     preferred_element_type=jnp.float32)        # (N_pad, TB)
    b_nodes = jax.nn.sigmoid(logits)                            # f32

    m0 = m0_ref[...]                                            # (NL_pad, N_pad)
    d = d_ref[...]                                              # (NL_pad, N_pad)

    # prob init: roots is None -> all probability mass on node 0.
    prob_nodes = (jax.lax.broadcasted_iota(jnp.int32, (Np, TB), 0) == 0
                  ).astype(jnp.float32)                         # (N_pad, TB)
    prob_leaves = jnp.zeros((Lp, TB), jnp.float32)              # (L_pad, TB)

    # Full transition matrix is Q = [p | I_on_leaf_rows]; exploiting its
    # structure and p[b, r, m] = b[b, m] * D[r, m] + M0[r, m]:
    #   new[r, b] = (D @ (b_nodes * prob_nodes))[r, b] + (M0 @ prob_nodes)[r, b]
    # Leaf rows are absorbing -> accumulate into prob_leaves.
    def body(_, carry):
        pn, plv = carry
        new = (jnp.dot(d, b_nodes * pn, preferred_element_type=jnp.float32)
               + jnp.dot(m0, pn, preferred_element_type=jnp.float32))
        return new[:Np, :], plv + new[Np:, :]

    prob_nodes, prob_leaves = jax.lax.fori_loop(
        0, num_jumps, body, (prob_nodes, prob_leaves), unroll=True)

    # interval():  x <= 0 -> eps ;  x >= 1 -> 1 - eps
    eps = jnp.float32(1e-5)
    ret = prob_leaves
    ret = jnp.where(ret > 0.0, ret, eps)
    ret = jnp.where(ret < 1.0, ret, jnp.float32(1.0) - eps)
    out_ref[...] = ret.astype(out_ref.dtype)


def _round_up(v, m):
    return ((v + m - 1) // m) * m


def graphs_forward(x, w, bias, m_left, m_right, *, num_jumps, batch_tile=128):
    """Returns (ret, loss_nodes) matching Graphs.forward_baseline (eval mode).

    x      : (B, F)
    w      : (G, N, F)   Linear4D weight
    bias   : (G, 1, N)   Linear4D bias
    m_left / m_right : (G, N+L, N)
    """
    B, F = x.shape
    G, N, _ = w.shape
    NL = m_left.shape[1]
    L = NL - N
    out_dtype = x.dtype

    # ---- one-off wrapper-side prep (per-graph constants, padding, layout) ----
    Fp = _round_up(F + 1, 128)            # +1: constant-1 column for the bias
    Np = _round_up(N, 8)
    Lp = _round_up(L, 8)
    NLp = Np + Lp
    TB = min(batch_tile, _round_up(B, 128))   # raise to 256-512 on v6e (128 MiB VMEM)
    Bp = _round_up(B, TB)

    # softmax over the destination axis (dim=1 of (G, N+L, N)) — precomputed,
    # reused across the whole batch and all jumps.
    m0 = jax.nn.softmax(m_left.astype(jnp.float32), axis=1)
    m1 = jax.nn.softmax(m_right.astype(jnp.float32), axis=1)
    dlt = m1 - m0

    def pad_nl(a):
        # (G, N+L, N) -> (G, NLp, Np), keeping node rows [0:Np) and leaf rows
        # [Np:NLp) in separate, zero-padded blocks.  Zero padding is inert.
        nodes = jnp.pad(a[:, :N, :], ((0, 0), (0, Np - N), (0, Np - N)))
        leaves = jnp.pad(a[:, N:, :], ((0, 0), (0, Lp - L), (0, Np - N)))
        return jnp.concatenate([nodes, leaves], axis=1)

    m0_p = pad_nl(m0)
    d_p = pad_nl(dlt)

    # Fold the bias into W via a constant-1 feature column at index F; bf16 MXU
    # operands with f32 accumulation inside the kernel.
    w_aug = jnp.zeros((G, Np, Fp), jnp.float32)
    w_aug = w_aug.at[:, :N, :F].set(w.astype(jnp.float32))
    w_aug = w_aug.at[:, :N, F].set(bias.reshape(G, N).astype(jnp.float32))
    w_bf16 = w_aug.astype(jnp.bfloat16)

    xT = jnp.zeros((Fp, Bp), jnp.float32)
    xT = xT.at[:F, :B].set(x.astype(jnp.float32).T)
    xT = xT.at[F, :B].set(1.0)
    xT_bf16 = xT.astype(jnp.bfloat16)

    kernel = functools.partial(
        _graphs_kernel, num_nodes_p=Np, num_jumps=num_jumps)

    out = pl.pallas_call(
        kernel,
        out_shape=jax.ShapeDtypeStruct((G, Lp, Bp), out_dtype),
        grid=(G, Bp // TB),
        in_specs=[
            pl.BlockSpec((Fp, TB), lambda g, bt: (0, bt)),         # xT tile
            pl.BlockSpec((None, Np, Fp), lambda g, bt: (g, 0, 0)),  # W[g]
            pl.BlockSpec((None, NLp, Np), lambda g, bt: (g, 0, 0)),  # M0[g]
            pl.BlockSpec((None, NLp, Np), lambda g, bt: (g, 0, 0)),  # D[g]
        ],
        out_specs=pl.BlockSpec((None, Lp, TB), lambda g, bt: (g, 0, bt)),
        compiler_params=pltpu.CompilerParams(
            dimension_semantics=("parallel", "parallel")),
    )(xT_bf16, w_bf16, m0_p, d_p)

    # (G, Lp, Bp) -> (B, L, G)  — matches PyTorch's permute(1, 2, 0).
    ret = jnp.transpose(out[:, :L, :B], (2, 1, 0))
    loss_nodes = jnp.zeros((), out_dtype)   # tau_regularization is None -> 0
    return ret, loss_nodes


def _reference_forward(x, w, bias, m_left, m_right, num_jumps):
    """Plain-JAX mirror of the PyTorch forward_baseline for verification.

    Uses the same bf16 rounding for the Linear4D step as the kernel so the
    comparison isolates the kernel's structure, not the dtype choice.
    """
    G, N, F = w.shape
    NL = m_left.shape[1]
    L = NL - N
    B = x.shape[0]

    logits = jnp.einsum('bf,gnf->gbn',
                        x.astype(jnp.bfloat16), w.astype(jnp.bfloat16),
                        preferred_element_type=jnp.float32)
    logits = logits + bias.reshape(G, 1, N).astype(jnp.bfloat16).astype(jnp.float32)
    b = jax.nn.sigmoid(logits)
    b = b[:, :, None, :]                                       # (G, B, 1, N)
    m0 = jax.nn.softmax(m_left.astype(jnp.float32), axis=1)
    m1 = jax.nn.softmax(m_right.astype(jnp.float32), axis=1)
    p = b * (m1 - m0)[:, None] + m0[:, None]                   # (G, B, NL, N)
    q = jnp.zeros((NL, L), jnp.float32).at[
        jnp.arange(N, NL), jnp.arange(L)].set(1.0)
    Q = jnp.concatenate([p, jnp.broadcast_to(q, (G, B, NL, L))], axis=-1)
    prob = jnp.zeros((G, B, NL), jnp.float32).at[..., 0].set(1.0)
    for _ in range(num_jumps):
        prob = jnp.einsum('gbnm,gbm->gbn', Q, prob)
    ret = jnp.transpose(prob[..., N:], (1, 2, 0))
    eps = 1e-5
    ret = jnp.where(ret > 0.0, ret, eps)
    ret = jnp.where(ret < 1.0, ret, 1.0 - eps)
    return ret.astype(x.dtype)


if __name__ == "__main__":
    # Small, module-consistent shapes; intentionally unaligned to exercise the
    # wrapper-side padding (B->256, F->128, N->8, L->16).
    B = 200          # batch
    F = 48           # in_features
    G = 2            # num_graphs
    N = 6            # num_nodes
    L = 10           # num_leaves
    NUM_JUMPS = 4    # num_jumps

    key = jax.random.PRNGKey(0)
    kx, kw, kb, kl, kr = jax.random.split(key, 5)

    x = jax.random.normal(kx, (B, F), jnp.float32)
    # Linear4D params (deterministic synthetic init)
    w = 0.1 * jax.random.normal(kw, (G, N, F), jnp.float32)
    bias = 0.1 * jax.random.normal(kb, (G, 1, N), jnp.float32)
    # reset_parameters(): nn.init.uniform_ -> U[0, 1)
    m_left = jax.random.uniform(kl, (G, N + L, N), jnp.float32)
    m_right = jax.random.uniform(kr, (G, N + L, N), jnp.float32)

    ret, loss_nodes = graphs_forward(x, w, bias, m_left, m_right,
                                     num_jumps=NUM_JUMPS)
    ret = jax.block_until_ready(ret)

    ref = _reference_forward(x, w, bias, m_left, m_right, NUM_JUMPS)
    assert ret.shape == (B, L, G)
    assert jnp.allclose(ret, ref, atol=2e-5, rtol=1e-4), (
        float(jnp.max(jnp.abs(ret - ref))))
    assert float(loss_nodes) == 0.0

    # TODO(synk): training-time paths (Gumbel node noise, gumbel_softmax with
    # tau, tau_regularization loss) are host/XLA-side and not part of this
    # eval-mode kernel.
    print("KERNEL_OK")
</pallas_src>

<mosaic_0001>
module attributes {stable_mosaic.version = 11 : i64} {
  func.func @_graphs_kernel(%arg0: i32, %arg1: i32, %arg2: memref<128x128xbf16, #tpu.memory_space<vmem>>, %arg3: memref<1x8x128xbf16, #tpu.memory_space<vmem>>, %arg4: memref<1x24x8xf32, #tpu.memory_space<vmem>>, %arg5: memref<1x24x8xf32, #tpu.memory_space<vmem>>, %arg6: memref<1x16x128xf32, #tpu.memory_space<vmem>>) attributes {dimension_semantics = [#tpu.dimension_semantics<parallel>, #tpu.dimension_semantics<parallel>], iteration_bounds = array<i64: 2, 2>, scalar_prefetch = 0 : i64, scratch_operands = 0 : i64, tpu.core_type = #tpu.core_type<tc>, window_params = [{transform_indices = @transform_0, window_bounds = array<i64: 128, 128>}, {transform_indices = @transform_1, window_bounds = array<i64: 1, 8, 128>}, {transform_indices = @transform_2, window_bounds = array<i64: 1, 24, 8>}, {transform_indices = @transform_3, window_bounds = array<i64: 1, 24, 8>}, {transform_indices = @transform_4, window_bounds = array<i64: 1, 16, 128>}]} {
    %c0 = arith.constant 0 : index
    %c0_0 = arith.constant 0 : index
    %c0_1 = arith.constant 0 : index
    %0 = vector.load %arg3[%c0, %c0_0, %c0_1] : memref<1x8x128xbf16, #tpu.memory_space<vmem>>, vector<1x8x128xbf16>
    %1 = vector.shape_cast %0 : vector<1x8x128xbf16> to vector<8x128xbf16>
    %c0_2 = arith.constant 0 : index
    %c0_3 = arith.constant 0 : index
    %2 = vector.load %arg2[%c0_2, %c0_3] : memref<128x128xbf16, #tpu.memory_space<vmem>>, vector<128x128xbf16>
    %cst = arith.constant dense<0.000000e+00> : vector<8x128xf32>
    %3 = tpu.matmul %1, %2, %cst {dimension_numbers = #tpu.dot_dimension_numbers<[1], [0], [0], [1], [0, 0, 1, 1], [], []>} : vector<8x128xbf16>, vector<128x128xbf16>, vector<8x128xf32> -> vector<8x128xf32>
    %4 = arith.negf %3 : vector<8x128xf32>
    %5 = math.exp %4 : vector<8x128xf32>
    %cst_4 = arith.constant 1.000000e+00 : f32
    %6 = vector.broadcast %cst_4 : f32 to vector<8x128xf32>
    %7 = arith.addf %6, %5 : vector<8x128xf32>
    %8 = arith.divf %6, %7 : vector<8x128xf32>
    %c0_5 = arith.constant 0 : index
    %c0_6 = arith.constant 0 : index
    %c0_7 = arith.constant 0 : index
    %9 = vector.load %arg4[%c0_5, %c0_6, %c0_7] : memref<1x24x8xf32, #tpu.memory_space<vmem>>, vector<1x24x8xf32>
    %10 = vector.shape_cast %9 : vector<1x24x8xf32> to vector<24x8xf32>
    %c0_8 = arith.constant 0 : index
    %c0_9 = arith.constant 0 : index
    %c0_10 = arith.constant 0 : index
    %11 = vector.load %arg5[%c0_8, %c0_9, %c0_10] : memref<1x24x8xf32, #tpu.memory_space<vmem>>, vector<1x24x8xf32>
    %12 = vector.shape_cast %11 : vector<1x24x8xf32> to vector<24x8xf32>
    %13 = tpu.iota {dimensions = array<i32: 0>} : vector<8x128xi32>
    %c0_i32 = arith.constant 0 : i32
    %14 = vector.broadcast %c0_i32 : i32 to vector<8x128xi32>
    %15 = arith.cmpi eq, %13, %14 : vector<8x128xi32>
    %16 = arith.extui %15 : vector<8x128xi1> to vector<8x128xi32>
    %17 = arith.sitofp %16 : vector<8x128xi32> to vector<8x128xf32>
    %cst_11 = arith.constant 0.000000e+00 : f32
    %18 = vector.broadcast %cst_11 : f32 to vector<16x128xf32>
    %c0_i32_12 = arith.constant 0 : i32
    %19 = arith.mulf %8, %17 : vector<8x128xf32>
    %cst_13 = arith.constant dense<0.000000e+00> : vector<24x128xf32>
    %20 = tpu.matmul %12, %19, %cst_13 {dimension_numbers = #tpu.dot_dimension_numbers<[1], [0], [0], [1], [0, 0, 1, 1], [], []>} : vector<24x8xf32>, vector<8x128xf32>, vector<24x128xf32> -> vector<24x128xf32>
    %cst_14 = arith.constant dense<0.000000e+00> : vector<24x128xf32>
    %21 = tpu.matmul %10, %17, %cst_14 {dimension_numbers = #tpu.dot_dimension_numbers<[1], [0], [0], [1], [0, 0, 1, 1], [], []>} : vector<24x8xf32>, vector<8x128xf32>, vector<24x128xf32> -> vector<24x128xf32>
    %22 = arith.addf %20, %21 : vector<24x128xf32>
    %23 = vector.extract_strided_slice %22 {offsets = [0, 0], sizes = [8, 128], strides = [1, 1]} : vector<24x128xf32> to vector<8x128xf32>
    %24 = vector.extract_strided_slice %22 {offsets = [8, 0], sizes = [16, 128], strides = [1, 1]} : vector<24x128xf32> to vector<16x128xf32>
    %25 = arith.addf %18, %24 : vector<16x128xf32>
    %c1_i32 = arith.constant 1 : i32
    %26 = arith.mulf %8, %23 : vector<8x128xf32>
    %cst_15 = arith.constant dense<0.000000e+00> : vector<24x128xf32>
    %27 = tpu.matmul %12, %26, %cst_15 {dimension_numbers = #tpu.dot_dimension_numbers<[1], [0], [0], [1], [0, 0, 1, 1], [], []>} : vector<24x8xf32>, vector<8x128xf32>, vector<24x128xf32> -> vector<24x128xf32>
    %cst_16 = arith.constant dense<0.000000e+00> : vector<24x128xf32>
    %28 = tpu.matmul %10, %23, %cst_16 {dimension_numbers = #tpu.dot_dimension_numbers<[1], [0], [0], [1], [0, 0, 1, 1], [], []>} : vector<24x8xf32>, vector<8x128xf32>, vector<24x128xf32> -> vector<24x128xf32>
    %29 = arith.addf %27, %28 : vector<24x128xf32>
    %30 = vector.extract_strided_slice %29 {offsets = [0, 0], sizes = [8, 128], strides = [1, 1]} : vector<24x128xf32> to vector<8x128xf32>
    %31 = vector.extract_strided_slice %29 {offsets = [8, 0], sizes = [16, 128], strides = [1, 1]} : vector<24x128xf32> to vector<16x128xf32>
    %32 = arith.addf %25, %31 : vector<16x128xf32>
    %c2_i32 = arith.constant 2 : i32
    %33 = arith.mulf %8, %30 : vector<8x128xf32>
    %cst_17 = arith.constant dense<0.000000e+00> : vector<24x128xf32>
    %34 = tpu.matmul %12, %33, %cst_17 {dimension_numbers = #tpu.dot_dimension_numbers<[1], [0], [0], [1], [0, 0, 1, 1], [], []>} : vector<24x8xf32>, vector<8x128xf32>, vector<24x128xf32> -> vector<24x128xf32>
    %cst_18 = arith.constant dense<0.000000e+00> : vector<24x128xf32>
    %35 = tpu.matmul %10, %30, %cst_18 {dimension_numbers = #tpu.dot_dimension_numbers<[1], [0], [0], [1], [0, 0, 1, 1], [], []>} : vector<24x8xf32>, vector<8x128xf32>, vector<24x128xf32> -> vector<24x128xf32>
    %36 = arith.addf %34, %35 : vector<24x128xf32>
    %37 = vector.extract_strided_slice %36 {offsets = [0, 0], sizes = [8, 128], strides = [1, 1]} : vector<24x128xf32> to vector<8x128xf32>
    %38 = vector.extract_strided_slice %36 {offsets = [8, 0], sizes = [16, 128], strides = [1, 1]} : vector<24x128xf32> to vector<16x128xf32>
    %39 = arith.addf %32, %38 : vector<16x128xf32>
    %c3_i32 = arith.constant 3 : i32
    %40 = arith.mulf %8, %37 : vector<8x128xf32>
    %cst_19 = arith.constant dense<0.000000e+00> : vector<24x128xf32>
    %41 = tpu.matmul %12, %40, %cst_19 {dimension_numbers = #tpu.dot_dimension_numbers<[1], [0], [0], [1], [0, 0, 1, 1], [], []>} : vector<24x8xf32>, vector<8x128xf32>, vector<24x128xf32> -> vector<24x128xf32>
    %cst_20 = arith.constant dense<0.000000e+00> : vector<24x128xf32>
    %42 = tpu.matmul %10, %37, %cst_20 {dimension_numbers = #tpu.dot_dimension_numbers<[1], [0], [0], [1], [0, 0, 1, 1], [], []>} : vector<24x8xf32>, vector<8x128xf32>, vector<24x128xf32> -> vector<24x128xf32>
    %43 = arith.addf %41, %42 : vector<24x128xf32>
    %44 = vector.extract_strided_slice %43 {offsets = [0, 0], sizes = [8, 128], strides = [1, 1]} : vector<24x128xf32> to vector<8x128xf32>
    %45 = vector.extract_strided_slice %43 {offsets = [8, 0], sizes = [16, 128], strides = [1, 1]} : vector<24x128xf32> to vector<16x128xf32>
    %46 = arith.addf %39, %45 : vector<16x128xf32>
    %cst_21 = arith.constant 0.000000e+00 : f32
    %47 = vector.broadcast %cst_21 : f32 to vector<16x128xf32>
    %48 = arith.cmpf ogt, %46, %47 : vector<16x128xf32>
    %cst_22 = arith.constant 9.99999974E-6 : f32
    %49 = vector.broadcast %cst_22 : f32 to vector<16x128xf32>
    %50 = arith.select %48, %46, %49 : vector<16x128xi1>, vector<16x128xf32>
    %cst_23 = arith.constant 1.000000e+00 : f32
    %51 = vector.broadcast %cst_23 : f32 to vector<16x128xf32>
    %52 = arith.cmpf olt, %50, %51 : vector<16x128xf32>
    %cst_24 = arith.constant 1.000000e+00 : f32
    %cst_25 = arith.constant 9.99999974E-6 : f32
    %53 = arith.subf %cst_24, %cst_25 : f32
    %54 = vector.broadcast %53 : f32 to vector<16x128xf32>
    %55 = arith.select %52, %50, %54 : vector<16x128xi1>, vector<16x128xf32>
    %c0_26 = arith.constant 0 : index
    %c0_27 = arith.constant 0 : index
    %c0_28 = arith.constant 0 : index
    %56 = vector.load %arg6[%c0_26, %c0_27, %c0_28] : memref<1x16x128xf32, #tpu.memory_space<vmem>>, vector<1x16x128xf32>
    %57 = vector.shape_cast %56 : vector<1x16x128xf32> to vector<16x128xf32>
    %58 = vector.shape_cast %55 : vector<16x128xf32> to vector<1x16x128xf32>
    tpu.vector_store %arg6[%c0_26, %c0_27, %c0_28], %58 {strides = array<i32>} : memref<1x16x128xf32, #tpu.memory_space<vmem>>, vector<1x16x128xf32>,
    return
  }
  func.func @transform_0(%arg0: i32, %arg1: i32) -> (i32, i32) {
    %c0_i32 = arith.constant 0 : i32
    %c0_i32_0 = arith.constant 0 : i32
    return %c0_i32, %arg1 : i32, i32
  }
  func.func @transform_1(%arg0: i32, %arg1: i32) -> (i32, i32, i32) {
    %c0_i32 = arith.constant 0 : i32
    %c0_i32_0 = arith.constant 0 : i32
    %c0_i32_1 = arith.constant 0 : i32
    return %arg0, %c0_i32, %c0_i32_0 : i32, i32, i32
  }
  func.func @transform_2(%arg0: i32, %arg1: i32) -> (i32, i32, i32) {
    %c0_i32 = arith.constant 0 : i32
    %c0_i32_0 = arith.constant 0 : i32
    %c0_i32_1 = arith.constant 0 : i32
    return %arg0, %c0_i32, %c0_i32_0 : i32, i32, i32
  }
  func.func @transform_3(%arg0: i32, %arg1: i32) -> (i32, i32, i32) {
    %c0_i32 = arith.constant 0 : i32
    %c0_i32_0 = arith.constant 0 : i32
    %c0_i32_1 = arith.constant 0 : i32
    return %arg0, %c0_i32, %c0_i32_0 : i32, i32, i32
  }
  func.func @transform_4(%arg0: i32, %arg1: i32) -> (i32, i32, i32) {
    %c0_i32 = arith.constant 0 : i32
    %c0_i32_0 = arith.constant 0 : i32
    return %arg0, %c0_i32, %arg1 : i32, i32, i32
  }
}

</mosaic_0001>

<llo_original>
// kernel: tpu_custom_call.1
$region0: #{tpu_custom_call.1}
  #allocation0 [shape = 'u32[]', space=smem, size = 0x4, offset = 0x4, fixed_abs, tag = 'smem constant byte address 0x4 - core index']
  #allocation1 [shape = 'u32[144,128]{1,0:T(1,128)}', space=vmem, size = 0x12000, scoped, tag = 'internal scratch']
  %s0 = inlined_call_operand.vmem [shape: bf16[128,256], index: 0, kind: input, shape index: {}]
  %s1 = inlined_call_operand.hbm [shape: bf16[2,8,128], index: 1, kind: input, shape index: {}]
  %s2 = inlined_call_operand.vmem [shape: f32[2,24,8], index: 2, kind: input, shape index: {}]
  %s3 = inlined_call_operand.vmem [shape: f32[2,24,8], index: 3, kind: input, shape index: {}]
  %s4 = inlined_call_operand.hbm [shape: f32[2,16,256], index: 4, kind: output, shape index: {}]
  %s5 = sld [smem:[#allocation0]]
  $region94: #{tpu_custom_call.1} parent=0
    _
  %s7 = ssub.s32 1, %s5
  %s8 = scalar_select 0, %s7, %s5
  $region1: #{tpu_custom_call.1} parent=0
    #allocation2 [shape = 'u8[65536]{0}', space=vmem, size = 0x10000, scoped, tag = 'input window, operand 0']
    #allocation3 [shape = 'u8[4096]{0}', space=vmem, size = 0x1000, scoped, tag = 'input window, operand 1']
    #allocation4 [shape = 's32[2]{0}', space=sflag, size = 0x8, scoped, tag = 'scoped memory for tpu_custom_call.1']
    #allocation5 [shape = 's32[2]{0}', space=sflag, size = 0x8, scoped, tag = 'scoped memory for tpu_custom_call.1']
    #allocation6 [shape = 'u8[16384]{0}', space=vmem, size = 0x4000, scoped, tag = 'output window, operand 0']
    %9 = vsyncpa [#allocation4], 0
    %s10 = scalar_lea.sflag [#allocation4], 1
    %11 = vsyncpa %s10, 0
    %12 = vsyncpa [#allocation5], 0
    %s13 = scalar_lea.sflag [#allocation5], 1
    %14 = vsyncpa %s13, 0
    loop: start=0, step=1, limit=6
    $region2: #{tpu_custom_call.1} parent=1 // loop_pre_header
      _
    $region3: #{tpu_custom_call.1} parent=1 // loop_header
      %s16 = sphi 0, %s20
      %p17 = scmp.ge.s32.totalorder %s16, 6
      %s23 = sphi 0, %s35
      %s24 = sphi 0, %s31
      %s25 = sphi 0, %s23
      %s26 = sphi 0, %s24
      %s27 = sphi 0, %s25
      %s28 = sphi 0, %s26
      %s38 = sphi 0, %s40
      %s41 = sphi 0, %s38
      %s42 = sphi 0, %s41
      %s58 = sphi 0, %s42
      %s64 = sphi 0, %s66
      %s67 = sphi 0, %s64
      %s68 = sphi 0, %s67
      %s84 = sphi 0, %s68
      %s90 = sphi 0, %s92
      %s93 = sphi 0, %s90
      %s94 = sphi 0, %s93
      %s110 = sphi 0, %s94
      %s116 = sphi 0, %s118
      %s119 = sphi 0, %s116
      %s120 = sphi 0, %s119
      %s136 = sphi 0, %s120
      %s144 = sphi 0, %s146
      %s147 = sphi 0, %s144
      %s148 = sphi 0, %s147
      %s164 = sphi 0, %s148
    $region4: #{tpu_custom_call.1} parent=1 // loop_header_branch
      %19 = sbr.rel (%p17) target = $region8
    $region5: #{tpu_custom_call.1} parent=1 // loop_body
      %s21 = ssub.s32 %s16, 1
      %s22 = ssub.s32 %s16, 2
      %s29 = sadd.s32 1, %s24
      %p30 = scmp.ge.s32.totalorder %s29, 2
      %s31 = scalar_select %p30, 0, %s29
      %s32 = sadd.s32 1, %s23
      %s33 = scalar_select %p30, %s32, %s23
      %p34 = scmp.ge.s32.totalorder %s33, 2
      %s35 = scalar_select %p34, 0, %s33
      %s36 = ssub.s32 %s24, %s31
      %p37 = scmp.eq.s32.totalorder %s36, 0
      %s39 = sadd.s32 %s38, 1
      %s40 = scalar_select %p37, %s38, %s39
      %p43 = pneg %p37
      %p44 = scmp.eq.s32.totalorder %s16, 3
      %p45 = por %p43, %p44
      %p46 = scmp.ne.s32.totalorder %s38, %s41
      %p47 = scmp.eq.s32.totalorder %s16, 0
      %p48 = por %p46, %p47
      %p49 = scmp.ne.s32.totalorder %s38, %s41
      %p50 = scmp.eq.s32.totalorder %s21, 3
      %p51 = por %p49, %p50
      %p52 = scmp.ne.s32.totalorder %s41, %s42
      %p53 = scmp.eq.s32.totalorder %s21, 0
      %p54 = por %p52, %p53
      %p55 = scmp.ne.s32.totalorder %s41, %s42
      %p56 = scmp.eq.s32.totalorder %s22, 3
      %p57 = por %p55, %p56
      %p59 = scmp.ne.s32.totalorder %s42, %s58
      %p60 = scmp.eq.s32.totalorder %s22, 0
      %p61 = por %p59, %p60
      %s62 = ssub.s32 %s23, %s35
      %p63 = scmp.eq.s32.totalorder %s62, 0
      %s65 = sadd.s32 %s64, 1
      %s66 = scalar_select %p63, %s64, %s65
      %p69 = pneg %p63
      %p70 = scmp.eq.s32.totalorder %s16, 3
      %p71 = por %p69, %p70
      %p72 = scmp.ne.s32.totalorder %s64, %s67
      %p73 = scmp.eq.s32.totalorder %s16, 0
      %p74 = por %p72, %p73
      %p75 = scmp.ne.s32.totalorder %s64, %s67
      %p76 = scmp.eq.s32.totalorder %s21, 3
      %p77 = por %p75, %p76
      %p78 = scmp.ne.s32.totalorder %s67, %s68
      %p79 = scmp.eq.s32.totalorder %s21, 0
      %p80 = por %p78, %p79
      %p81 = scmp.ne.s32.totalorder %s67, %s68
      %p82 = scmp.eq.s32.totalorder %s22, 3
      %p83 = por %p81, %p82
      %p85 = scmp.ne.s32.totalorder %s68, %s84
      %p86 = scmp.eq.s32.totalorder %s22, 0
      %p87 = por %p85, %p86
      %s88 = ssub.s32 %s23, %s35
      %p89 = scmp.eq.s32.totalorder %s88, 0
      %s91 = sadd.s32 %s90, 1
      %s92 = scalar_select %p89, %s90, %s91
      %p95 = pneg %p89
      %p96 = scmp.eq.s32.totalorder %s16, 3
      %p97 = por %p95, %p96
      %p98 = scmp.ne.s32.totalorder %s90, %s93
      %p99 = scmp.eq.s32.totalorder %s16, 0
      %p100 = por %p98, %p99
      %p101 = scmp.ne.s32.totalorder %s90, %s93
      %p102 = scmp.eq.s32.totalorder %s21, 3
      %p103 = por %p101, %p102
      %p104 = scmp.ne.s32.totalorder %s93, %s94
      %p105 = scmp.eq.s32.totalorder %s21, 0
      %p106 = por %p104, %p105
      %p107 = scmp.ne.s32.totalorder %s93, %s94
      %p108 = scmp.eq.s32.totalorder %s22, 3
      %p109 = por %p107, %p108
      %p111 = scmp.ne.s32.totalorder %s94, %s110
      %p112 = scmp.eq.s32.totalorder %s22, 0
      %p113 = por %p111, %p112
      %s114 = ssub.s32 %s23, %s35
      %p115 = scmp.eq.s32.totalorder %s114, 0
      %s117 = sadd.s32 %s116, 1
      %s118 = scalar_select %p115, %s116, %s117
      %p121 = pneg %p115
      %p122 = scmp.eq.s32.totalorder %s16, 3
      %p123 = por %p121, %p122
      %p124 = scmp.ne.s32.totalorder %s116, %s119
      %p125 = scmp.eq.s32.totalorder %s16, 0
      %p126 = por %p124, %p125
      %p127 = scmp.ne.s32.totalorder %s116, %s119
      %p128 = scmp.eq.s32.totalorder %s21, 3
      %p129 = por %p127, %p128
      %p130 = scmp.ne.s32.totalorder %s119, %s120
      %p131 = scmp.eq.s32.totalorder %s21, 0
      %p132 = por %p130, %p131
      %p133 = scmp.ne.s32.totalorder %s119, %s120
      %p134 = scmp.eq.s32.totalorder %s22, 3
      %p135 = por %p133, %p134
      %p137 = scmp.ne.s32.totalorder %s120, %s136
      %p138 = scmp.eq.s32.totalorder %s22, 0
      %p139 = por %p137, %p138
      %s140 = ssub.s32 %s23, %s35
      %s141 = ssub.s32 %s24, %s31
      %s142 = sor.u32 %s140, %s141
      %p143 = scmp.eq.s32.totalorder %s142, 0
      %s145 = sadd.s32 %s144, 1
      %s146 = scalar_select %p143, %s144, %s145
      %p149 = pneg %p143
      %p150 = scmp.eq.s32.totalorder %s16, 3
      %p151 = por %p149, %p150
      %p152 = scmp.ne.s32.totalorder %s144, %s147
      %p153 = scmp.eq.s32.totalorder %s16, 0
      %p154 = por %p152, %p153
      %p155 = scmp.ne.s32.totalorder %s144, %s147
      %p156 = scmp.eq.s32.totalorder %s21, 3
      %p157 = por %p155, %p156
      %p158 = scmp.ne.s32.totalorder %s147, %s148
      %p159 = scmp.eq.s32.totalorder %s21, 0
      %p160 = por %p158, %p159
      %p161 = scmp.ne.s32.totalorder %s147, %s148
      %p162 = scmp.eq.s32.totalorder %s22, 3
      %p163 = por %p161, %p162
      %p165 = scmp.ne.s32.totalorder %s148, %s164
      %p166 = scmp.eq.s32.totalorder %s22, 0
      %p167 = por %p165, %p166
      %p168 = scmp.le.s32.totalorder 1, %s16
      %p169 = scmp.lt.s32.totalorder %s16, 5
      %p170 = pnand %p168, %p169
      %p171 = pneg %p170
      // Predicated region
      $region9: #{tpu_custom_call.1} parent=5 // pred_check
        _
      $region10: #{tpu_custom_call.1} parent=5 // pred_check_branch
        %173 = sbr.rel (%p170) target = $region12
      $region11: #{tpu_custom_call.1} parent=5 // pred_region
        %s174 = ssub.s32 %s16, 1
      $region12: #{tpu_custom_call.1} parent=5 // pred_fallthru
        _
      %p175 = scmp.lt.s32.totalorder %s16, 4
      // Predicated region
      $region13: #{tpu_custom_call.1} parent=5 // pred_check
        %p176 = pneg %p175
      $region14: #{tpu_custom_call.1} parent=5 // pred_check_branch
        %178 = sbr.rel (%p176) target = $region16
      $region15: #{tpu_custom_call.1} parent=5 // pred_region
        // Predicated region
        $region17: #{tpu_custom_call.1} parent=15 // pred_check
          %p179 = pneg %p48
        $region18: #{tpu_custom_call.1} parent=15 // pred_check_branch
          %181 = sbr.rel (%p179) target = $region20
        $region19: #{tpu_custom_call.1} parent=15 // pred_region
          %s182 = sand.u32 %s38, 1
          %s183 = sand.u32 %s38, 1
          %s184 = smul.addr %s183, 64
          %s185 = scalar_lea.vmem [#allocation2], %s184
          %s186 = smul.addr %s24, 4
          %s187 = scalar_lea.vmem %s0, %s186
          // Predicated region
          $region21: #{tpu_custom_call.1} parent=19 // pred_check
            _
          $region22: #{tpu_custom_call.1} parent=19 // pred_check_branch
            %189 = sbr.rel (0) target = $region24
          $region23: #{tpu_custom_call.1} parent=19 // pred_region
            // Predicated region
            $region25: #{tpu_custom_call.1} parent=23 // pred_check
              _
            $region26: #{tpu_custom_call.1} parent=23 // pred_check_branch
              %191 = sbr.rel target = $region28
            $region27: #{tpu_custom_call.1} parent=23 // pred_region
              // Predicated region
              $region40: #{tpu_custom_call.1} parent=27 // pred_check
                _
              $region41: #{tpu_custom_call.1} parent=27 // pred_check_branch
                %236 = sbr.rel (0) target = $region43
              $region42: #{tpu_custom_call.1} parent=27 // pred_region
                loop: start=0, step=1, limit=1
                $region44: #{tpu_custom_call.1} parent=42 // loop_pre_header
                  _
                $region45: #{tpu_custom_call.1} parent=42 // loop_header
                  %s238 = sphi 0, %s242
                  %p239 = scmp.ge.s32.totalorder %s238, 1
                  %s243 = sphi %s187, %s187
                  %s244 = sphi %s185, %s185
                $region46: #{tpu_custom_call.1} parent=42 // loop_header_branch
                  %241 = sbr.rel (%p239) target = $region50
                $region47: #{tpu_custom_call.1} parent=42 // loop_body
                  _
                $region48: #{tpu_custom_call.1} parent=42 // loop_footer
                  %s242 = sadd.s32 1, %s238
                $region49: #{tpu_custom_call.1} parent=42 // loop_footer_branch
                  %237 = sbr.rel target = $region45
                $region50: #{tpu_custom_call.1} parent=42 // loop_exit
                  _
                loop: start=0, step=1, limit=1
                $region51: #{tpu_custom_call.1} parent=42 // loop_pre_header
                  _
                $region52: #{tpu_custom_call.1} parent=42 // loop_header
                  %s247 = sphi 0, %s251
                  %p248 = scmp.ge.s32.totalorder %s247, 1
                  %s252 = sphi %s187, %s187
                  %s253 = sphi %s185, %s185
                $region53: #{tpu_custom_call.1} parent=42 // loop_header_branch
                  %250 = sbr.rel (%p248) target = $region57
                $region54: #{tpu_custom_call.1} parent=42 // loop_body
                  %v254 = vld [vmem:[%s252] sm:$0xf]
                  %255 = vst [vmem:[%s253] sm:$0xf] %v254
                  %v256 = vld [vmem:[%s252 + $0x8] sm:$0xf]
                  %257 = vst [vmem:[%s253 + $0x4] sm:$0xf] %v256
                  %v258 = vld [vmem:[%s252 + $0x10] sm:$0xf]
                  %259 = vst [vmem:[%s253 + $0x8] sm:$0xf] %v258
                  %v260 = vld [vmem:[%s252 + $0x18] sm:$0xf]
                  %261 = vst [vmem:[%s253 + $0xc] sm:$0xf] %v260
                  %v262 = vld [vmem:[%s252 + $0x20] sm:$0xf]
                  %263 = vst [vmem:[%s253 + $0x10] sm:$0xf] %v262
                  %v264 = vld [vmem:[%s252 + $0x28] sm:$0xf]
                  %265 = vst [vmem:[%s253 + $0x14] sm:$0xf] %v264
                  %v266 = vld [vmem:[%s252 + $0x30] sm:$0xf]
                  %267 = vst [vmem:[%s253 + $0x18] sm:$0xf] %v266
                  %v268 = vld [vmem:[%s252 + $0x38] sm:$0xf]
                  %269 = vst [vmem:[%s253 + $0x1c] sm:$0xf] %v268
                  %v270 = vld [vmem:[%s252 + $0x40] sm:$0xf]
                  %271 = vst [vmem:[%s253 + $0x20] sm:$0xf] %v270
                  %v272 = vld [vmem:[%s252 + $0x48] sm:$0xf]
                  %273 = vst [vmem:[%s253 + $0x24] sm:$0xf] %v272
                  %v274 = vld [vmem:[%s252 + $0x50] sm:$0xf]
                  %275 = vst [vmem:[%s253 + $0x28] sm:$0xf] %v274
                  %v276 = vld [vmem:[%s252 + $0x58] sm:$0xf]
                  %277 = vst [vmem:[%s253 + $0x2c] sm:$0xf] %v276
                  %v278 = vld [vmem:[%s252 + $0x60] sm:$0xf]
                  %279 = vst [vmem:[%s253 + $0x30] sm:$0xf] %v278
                  %v280 = vld [vmem:[%s252 + $0x68] sm:$0xf]
                  %281 = vst [vmem:[%s253 + $0x34] sm:$0xf] %v280
                  %v282 = vld [vmem:[%s252 + $0x70] sm:$0xf]
                  %283 = vst [vmem:[%s253 + $0x38] sm:$0xf] %v282
                  %v284 = vld [vmem:[%s252 + $0x78] sm:$0xf]
                  %285 = vst [vmem:[%s253 + $0x3c] sm:$0xf] %v284
                $region55: #{tpu_custom_call.1} parent=42 // loop_footer
                  %s251 = sadd.s32 1, %s247
                $region56: #{tpu_custom_call.1} parent=42 // loop_footer_branch
                  %246 = sbr.rel target = $region52
                $region57: #{tpu_custom_call.1} parent=42 // loop_exit
                  _
              $region43: #{tpu_custom_call.1} parent=27 // pred_fallthru
                _
            $region28: #{tpu_custom_call.1} parent=23 // pred_fallthru
              _
            // Predicated region
            $region29: #{tpu_custom_call.1} parent=23 // pred_check
              _
            $region30: #{tpu_custom_call.1} parent=23 // pred_check_branch
              %193 = sbr.rel (0) target = $region32
            $region31: #{tpu_custom_call.1} parent=23 // pred_region
              loop: start=0, step=1, limit=1
              $region33: #{tpu_custom_call.1} parent=31 // loop_pre_header
                _
              $region34: #{tpu_custom_call.1} parent=31 // loop_header
                %s196 = sphi 0, %s200
                %p197 = scmp.ge.s32.totalorder %s196, 1
                %s201 = sphi %s187, %s187
                %s202 = sphi %s185, %s185
              $region35: #{tpu_custom_call.1} parent=31 // loop_header_branch
                %199 = sbr.rel (%p197) target = $region39
              $region36: #{tpu_custom_call.1} parent=31 // loop_body
                %v203 = vld [vmem:[%s201] sm:$0xf]
                %204 = vst [vmem:[%s202] sm:$0xf] %v203
                %v205 = vld [vmem:[%s201 + $0x8] sm:$0xf]
                %206 = vst [vmem:[%s202 + $0x4] sm:$0xf] %v205
                %v207 = vld [vmem:[%s201 + $0x10] sm:$0xf]
                %208 = vst [vmem:[%s202 + $0x8] sm:$0xf] %v207
                %v209 = vld [vmem:[%s201 + $0x18] sm:$0xf]
                %210 = vst [vmem:[%s202 + $0xc] sm:$0xf] %v209
                %v211 = vld [vmem:[%s201 + $0x20] sm:$0xf]
                %212 = vst [vmem:[%s202 + $0x10] sm:$0xf] %v211
                %v213 = vld [vmem:[%s201 + $0x28] sm:$0xf]
                %214 = vst [vmem:[%s202 + $0x14] sm:$0xf] %v213
                %v215 = vld [vmem:[%s201 + $0x30] sm:$0xf]
                %216 = vst [vmem:[%s202 + $0x18] sm:$0xf] %v215
                %v217 = vld [vmem:[%s201 + $0x38] sm:$0xf]
                %218 = vst [vmem:[%s202 + $0x1c] sm:$0xf] %v217
                %v219 = vld [vmem:[%s201 + $0x40] sm:$0xf]
                %220 = vst [vmem:[%s202 + $0x20] sm:$0xf] %v219
                %v221 = vld [vmem:[%s201 + $0x48] sm:$0xf]
                %222 = vst [vmem:[%s202 + $0x24] sm:$0xf] %v221
                %v223 = vld [vmem:[%s201 + $0x50] sm:$0xf]
                %224 = vst [vmem:[%s202 + $0x28] sm:$0xf] %v223
                %v225 = vld [vmem:[%s201 + $0x58] sm:$0xf]
                %226 = vst [vmem:[%s202 + $0x2c] sm:$0xf] %v225
                %v227 = vld [vmem:[%s201 + $0x60] sm:$0xf]
                %228 = vst [vmem:[%s202 + $0x30] sm:$0xf] %v227
                %v229 = vld [vmem:[%s201 + $0x68] sm:$0xf]
                %230 = vst [vmem:[%s202 + $0x34] sm:$0xf] %v229
                %v231 = vld [vmem:[%s201 + $0x70] sm:$0xf]
                %232 = vst [vmem:[%s202 + $0x38] sm:$0xf] %v231
                %v233 = vld [vmem:[%s201 + $0x78] sm:$0xf]
                %234 = vst [vmem:[%s202 + $0x3c] sm:$0xf] %v233
              $region37: #{tpu_custom_call.1} parent=31 // loop_footer
                %s200 = sadd.s32 1, %s196
              $region38: #{tpu_custom_call.1} parent=31 // loop_footer_branch
                %195 = sbr.rel target = $region34
              $region39: #{tpu_custom_call.1} parent=31 // loop_exit
                _
            $region32: #{tpu_custom_call.1} parent=23 // pred_fallthru
              _
          $region24: #{tpu_custom_call.1} parent=19 // pred_fallthru
            _
          %286 = vnop
        $region20: #{tpu_custom_call.1} parent=15 // pred_fallthru
          _
        // Predicated region
        $region58: #{tpu_custom_call.1} parent=15 // pred_check
          %p287 = pneg %p74
        $region59: #{tpu_custom_call.1} parent=15 // pred_check_branch
          %289 = sbr.rel (%p287) target = $region61
        $region60: #{tpu_custom_call.1} parent=15 // pred_region
          %s290 = sand.u32 %s64, 1
          %s291 = scalar_lea.sflag [#allocation4], %s290
          %s292 = sand.u32 %s64, 1
          %s293 = smul.addr %s292, 4
          %s294 = scalar_lea.vmem [#allocation3], %s293
          %s296 = ssub.s32 64, 64
          %297 = vsyncadd %s291, %s296
          %s298 = smul.addr %s23, 64
          %s299 = scalar_lea.hbm %s1, %s298
          %s301 = sshll.u32 %s294, 4
          %s302 = int_to_ptr.vmem [resolvable:$true] %s301
          %304 = dma.hbm_to_vmem [thread:$0]  %s299, 64, %s302, %s291
        $region61: #{tpu_custom_call.1} parent=15 // pred_fallthru
          _
        // Predicated region
        $region62: #{tpu_custom_call.1} parent=15 // pred_check
          %p305 = pneg %p100
        $region63: #{tpu_custom_call.1} parent=15 // pred_check_branch
          %307 = sbr.rel (%p305) target = $region65
        $region64: #{tpu_custom_call.1} parent=15 // pred_region
          %p308 = scmp.lt.s32.totalorder %s23, 1
          %s309 = scalar_select %p308, %s23, 1
          %s310 = smul.addr %s309, 3
          %s311 = smul.addr %s310, 8
          %s312 = scalar_lea.vmem %s2, %s311
        $region65: #{tpu_custom_call.1} parent=15 // pred_fallthru
          _
        // Predicated region
        $region66: #{tpu_custom_call.1} parent=15 // pred_check
          %p313 = pneg %p126
        $region67: #{tpu_custom_call.1} parent=15 // pred_check_branch
          %315 = sbr.rel (%p313) target = $region69
        $region68: #{tpu_custom_call.1} parent=15 // pred_region
          %p316 = scmp.lt.s32.totalorder %s23, 1
          %s317 = scalar_select %p316, %s23, 1
          %s318 = smul.addr %s317, 3
          %s319 = smul.addr %s318, 8
          %s320 = scalar_lea.vmem %s3, %s319
        $region69: #{tpu_custom_call.1} parent=15 // pred_fallthru
          _
      $region16: #{tpu_custom_call.1} parent=5 // pred_fallthru
        _
      %p321 = scmp.le.s32.totalorder 1, %s16
      %p322 = scmp.lt.s32.totalorder %s16, 5
      %p323 = pnand %p321, %p322
      %p324 = pneg %p323
      // Predicated region
      $region70: #{tpu_custom_call.1} parent=5 // pred_check
        _
      $region71: #{tpu_custom_call.1} parent=5 // pred_check_branch
        %326 = sbr.rel (%p323) target = $region73
      $region72: #{tpu_custom_call.1} parent=5 // pred_region
        %s327 = ssub.s32 %s16, 1
        %s328 = sand.u32 %s41, 1
        %s329 = sand.u32 %s41, 1
        %s330 = smul.addr %s329, 64
        %s331 = scalar_lea.vmem [#allocation2], %s330
        // Predicated region
        $region74: #{tpu_custom_call.1} parent=72 // pred_check
          %p332 = pneg %p54
        $region75: #{tpu_custom_call.1} parent=72 // pred_check_branch
          %334 = sbr.rel (%p332) target = $region77
        $region76: #{tpu_custom_call.1} parent=72 // pred_region
          _
        $region77: #{tpu_custom_call.1} parent=72 // pred_fallthru
          _
        %s335 = sand.u32 %s67, 1
        %s336 = scalar_lea.sflag [#allocation4], %s335
        %s337 = sand.u32 %s67, 1
        %s338 = smul.addr %s337, 4
        %s339 = scalar_lea.vmem [#allocation3], %s338
        // Predicated region
        $region78: #{tpu_custom_call.1} parent=72 // pred_check
          %p340 = pneg %p80
        $region79: #{tpu_custom_call.1} parent=72 // pred_check_branch
          %342 = sbr.rel (%p340) target = $region81
        $region80: #{tpu_custom_call.1} parent=72 // pred_region
          %343 = dma.done %s336, 64
        $region81: #{tpu_custom_call.1} parent=72 // pred_fallthru
          _
        %s344 = sand.u32 %s41, 1
        %s345 = sand.u32 %s41, 1
        %s346 = smul.addr %s345, 64
        %s347 = scalar_lea.vmem [#allocation2], %s346
        %p348 = pneg %p54
        %p349 = pneg %p51
        %s350 = sand.u32 %s67, 1
        %s351 = scalar_lea.sflag [#allocation4], %s350
        %s352 = sand.u32 %s67, 1
        %s353 = smul.addr %s352, 4
        %s354 = scalar_lea.vmem [#allocation3], %s353
        %p355 = pneg %p80
        %p356 = pneg %p77
        %p357 = scmp.lt.s32.totalorder %s25, 1
        %s358 = scalar_select %p357, %s25, 1
        %s359 = smul.addr %s358, 3
        %s360 = smul.addr %s359, 8
        %s361 = scalar_lea.vmem %s2, %s360
        %p362 = pneg %p106
        %p363 = pneg %p103
        %p364 = scmp.lt.s32.totalorder %s25, 1
        %s365 = scalar_select %p364, %s25, 1
        %s366 = smul.addr %s365, 3
        %s367 = smul.addr %s366, 8
        %s368 = scalar_lea.vmem %s3, %s367
        %p369 = pneg %p132
        %p370 = pneg %p129
        %p371 = pneg %p160
        %p372 = pneg %p157
        %s373 = sand.u32 %s147, 1
        %s374 = scalar_lea.sflag [#allocation5], %s373
        %s375 = sand.u32 %s147, 1
        %s376 = smul.addr %s375, 16
        %s377 = scalar_lea.vmem [#allocation6], %s376
        %p378 = scmp.lt.s32.totalorder %s25, 1
        %s379 = scalar_select %p378, %s25, 1
        %s380 = smul.addr %s379, 3
        %s381 = smul.addr %s380, 8
        %s382 = scalar_lea.vmem %s2, %s381
        %p383 = scmp.lt.s32.totalorder %s25, 1
        %s384 = scalar_select %p383, %s25, 1
        %s385 = smul.addr %s384, 3
        %s386 = smul.addr %s385, 8
        %s387 = scalar_lea.vmem %s3, %s386
        %v389 = vld [vmem:[%s339] sm:$0xf]
        %v390 = vld [vmem:[%s331] sm:$0xf]
        %v391 = vld [vmem:[%s331 + $0x4] sm:$0xf]
        %v392 = vld [vmem:[%s331 + $0x8] sm:$0xf]
        %v393 = vld [vmem:[%s331 + $0xc] sm:$0xf]
        %v394 = vld [vmem:[%s331 + $0x10] sm:$0xf]
        %v395 = vld [vmem:[%s331 + $0x14] sm:$0xf]
        %v396 = vld [vmem:[%s331 + $0x18] sm:$0xf]
        %v397 = vld [vmem:[%s331 + $0x1c] sm:$0xf]
        %v398 = vld [vmem:[%s331 + $0x20] sm:$0xf]
        %v399 = vld [vmem:[%s331 + $0x24] sm:$0xf]
        %v400 = vld [vmem:[%s331 + $0x28] sm:$0xf]
        %v401 = vld [vmem:[%s331 + $0x2c] sm:$0xf]
        %v402 = vld [vmem:[%s331 + $0x30] sm:$0xf]
        %v403 = vld [vmem:[%s331 + $0x34] sm:$0xf]
        %v404 = vld [vmem:[%s331 + $0x38] sm:$0xf]
        %v405 = vld [vmem:[%s331 + $0x3c] sm:$0xf]
        %v422 = vunpack.c.l.b16 %v390
        %v423 = vunpack.c.l.b16 %v391
        %v424 = vunpack.c.l.b16 %v392
        %v425 = vunpack.c.l.b16 %v393
        %v426 = vunpack.c.l.b16 %v394
        %v427 = vunpack.c.l.b16 %v395
        %v428 = vunpack.c.l.b16 %v396
        %v429 = vunpack.c.l.b16 %v397
        %v430 = vunpack.c.l.b16 %v398
        %v431 = vunpack.c.l.b16 %v399
        %v432 = vunpack.c.l.b16 %v400
        %v433 = vunpack.c.l.b16 %v401
        %v434 = vunpack.c.l.b16 %v402
        %v435 = vunpack.c.l.b16 %v403
        %v436 = vunpack.c.l.b16 %v404
        %v437 = vunpack.c.l.b16 %v405
        %v438 = vpack.c.b16 %v423, %v422
        %v439 = vpack.c.b16 %v425, %v424
        %v440 = vpack.c.b16 %v427, %v426
        %v441 = vpack.c.b16 %v429, %v428
        %v442 = vpack.c.b16 %v431, %v430
        %v443 = vpack.c.b16 %v433, %v432
        %v444 = vpack.c.b16 %v435, %v434
        %v445 = vpack.c.b16 %v437, %v436
        %454 = vmatprep.subr.bf16.mxu0 0
        %455 = vmatpush1.bf16.msra.mxu0 %v438
        %456 = vmatprep.subr.bf16.mxu0 0
        %457 = vmatpush1.bf16.msra.mxu0 %v439
        %458 = vmatprep.subr.bf16.mxu0 0
        %459 = vmatpush1.bf16.msra.mxu0 %v440
        %460 = vmatprep.subr.bf16.mxu0 0
        %461 = vmatpush1.bf16.msra.mxu0 %v441
        %462 = vmatprep.subr.bf16.mxu0 0
        %463 = vmatpush1.bf16.msra.mxu0 %v442
        %464 = vmatprep.subr.bf16.mxu0 0
        %465 = vmatpush1.bf16.msra.mxu0 %v443
        %466 = vmatprep.subr.bf16.mxu0 0
        %467 = vmatpush1.bf16.msra.mxu0 %v444
        %468 = vmatprep.subr.bf16.mxu0 0
        %469 = vmatpush1.bf16.msra.mxu0 %v445
        %470 = vmatprep.subr.bf16.mxu0 0
        %471 = vmatpush1.bf16.msra.mxu0 0
        %472 = vmatprep.subr.bf16.mxu0 0
        %473 = vmatpush1.bf16.msra.mxu0 0
        %474 = vmatprep.subr.bf16.mxu0 0
        %475 = vmatpush1.bf16.msra.mxu0 0
        %476 = vmatprep.subr.bf16.mxu0 0
        %477 = vmatpush1.bf16.msra.mxu0 0
        %478 = vmatprep.subr.bf16.mxu0 0
        %479 = vmatpush1.bf16.msra.mxu0 0
        %480 = vmatprep.subr.bf16.mxu0 0
        %481 = vmatpush1.bf16.msra.mxu0 0
        %482 = vmatprep.subr.bf16.mxu0 0
        %483 = vmatpush1.bf16.msra.mxu0 0
        %484 = vmatprep.subr.bf16.mxu0 0
        %485 = vmatpush1.bf16.msra.mxu0 0
        %486 = vmatprep.mubr.bf16.mxu0 0
        %487 = vmatmul.mubr.bf16.gmra.mrb[0].mxu0 %v389
        %v488 = vpop.f32.mrb[0].mxu0
        %v489 = vadd.f32 0.0, %v488
        %v490 = vpop.f32.mrb[0].mxu0
        %v491 = vpop.f32.mrb[0].mxu0
        %v492 = vpop.f32.mrb[0].mxu0
        %493 = vdwg.mxu0
        %v494 = vxor.u32 %v489, 2147483648
        %v495 = vmul.f32 %v494, 1.442695
        %v496 = vpow.pop %v495
        %v497 = vadd.f32 %v496, 1.0
        %v498 = vrcp.pop %v497
        %v499 = vmul.f32 1.0, %v498
        %v500 = vld [vmem:[%s382] sm:$0xff]
        %v501 = vld [vmem:[%s382 + $0x8] sm:$0xff]
        %v502 = vld [vmem:[%s382 + $0x10] sm:$0xff]
        %v503 = vld [vmem:[%s387] sm:$0xff]
        %v504 = vld [vmem:[%s387 + $0x8] sm:$0xff]
        %v505 = vld [vmem:[%s387 + $0x10] sm:$0xff]
        %v506 = vlaneseq
        %v507 = vshrl.u32 %v506, 7
        %vm508 = vcmp.eq.s32.totalorder %v507, 0
        %v509 = vsel %vm508, 1, 0
        %v510 = vcvt.s32.f32 %v509
        %v511 = vmul.f32 %v499, %v510
        %vm512 = vcmask 64512
        %v514 = vsel %vm512, %v500, 0
        %v517 = vsel %vm512, %v501, 0
        %v520 = vsel %vm512, %v502, 0
        %522 = vmatprep.subr.mxu0 0.0
        %523 = vmatpush1.msra.mxu0 %v510
        %524 = vmatprep.subr.mxu0 0.0
        %525 = vmatpush1.msra.mxu0 0.0
        %526 = vmatprep.subr.mxu0 0.0
        %527 = vmatpush1.msra.mxu0 0.0
        %528 = vmatprep.subr.mxu0 0.0
        %529 = vmatpush1.msra.mxu0 0.0
        %530 = vmatprep.subr.mxu0 0.0
        %531 = vmatpush1.msra.mxu0 0.0
        %532 = vmatprep.subr.mxu0 0.0
        %533 = vmatpush1.msra.mxu0 0.0
        %534 = vmatprep.subr.mxu0 0.0
        %535 = vmatpush1.msra.mxu0 0.0
        %536 = vmatprep.subr.mxu0 0.0
        %537 = vmatpush1.msra.mxu0 0.0
        %538 = vmatprep.subr.mxu0 0.0
        %539 = vmatpush1.msra.mxu0 0.0
        %540 = vmatprep.subr.mxu0 0.0
        %541 = vmatpush1.msra.mxu0 0.0
        %542 = vmatprep.subr.mxu0 0.0
        %543 = vmatpush1.msra.mxu0 0.0
        %544 = vmatprep.subr.mxu0 0.0
        %545 = vmatpush1.msra.mxu0 0.0
        %546 = vmatprep.subr.mxu0 0.0
        %547 = vmatpush1.msra.mxu0 0.0
        %548 = vmatprep.subr.mxu0 0.0
        %549 = vmatpush1.msra.mxu0 0.0
        %550 = vmatprep.subr.mxu0 0.0
        %551 = vmatpush1.msra.mxu0 0.0
        %552 = vmatprep.subr.mxu0 0.0
        %553 = vmatpush1.msra.mxu0 0.0
        %554 = vmatprep.subr.mxu0 0.0
        %555 = vmatpush1.msra.mxu0 0.0
        %556 = vmatprep.subr.mxu0 0.0
        %557 = vmatpush1.msra.mxu0 0.0
        %558 = vmatprep.subr.mxu0 0.0
        %559 = vmatpush1.msra.mxu0 0.0
        %560 = vmatprep.subr.mxu0 0.0
        %561 = vmatpush1.msra.mxu0 0.0
        %562 = vmatprep.subr.mxu0 0.0
        %563 = vmatpush1.msra.mxu0 0.0
        %564 = vmatprep.subr.mxu0 0.0
        %565 = vmatpush1.msra.mxu0 0.0
        %566 = vmatprep.subr.mxu0 0.0
        %567 = vmatpush1.msra.mxu0 0.0
        %568 = vmatprep.subr.mxu0 0.0
        %569 = vmatpush1.msra.mxu0 0.0
        %570 = vmatprep.subr.mxu0 0.0
        %571 = vmatpush1.msra.mxu0 0.0
        %572 = vmatprep.subr.mxu0 0.0
        %573 = vmatpush1.msra.mxu0 0.0
        %574 = vmatprep.subr.mxu0 0.0
        %575 = vmatpush1.msra.mxu0 0.0
        %576 = vmatprep.subr.mxu0 0.0
        %577 = vmatpush1.msra.mxu0 0.0
        %578 = vmatprep.subr.mxu0 0.0
        %579 = vmatpush1.msra.mxu0 0.0
        %580 = vmatprep.subr.mxu0 0.0
        %581 = vmatpush1.msra.mxu0 0.0
        %582 = vmatprep.subr.mxu0 0.0
        %583 = vmatpush1.msra.mxu0 0.0
        %584 = vmatprep.subr.mxu0 0.0
        %585 = vmatpush1.msra.mxu0 0.0
        %586 = vmatprep.mubr.f32.mxu0 0.0
        %587 = vmatmul.mubr.f32.gmra.mrb[0].mxu0 %v514
        %v588 = vpop.f32.mrb[0].mxu0
        %v589 = vadd.f32 0.0, %v588
        %v590 = vpop.f32.mrb[0].mxu0
        %591 = vmatprep.mubr.f32.mxu0 0.0
        %592 = vmatmul.mubr.f32.gmra.mrb[0].mxu0 %v517
        %v593 = vpop.f32.mrb[0].mxu0
        %v594 = vadd.f32 0.0, %v593
        %v595 = vpop.f32.mrb[0].mxu0
        %596 = vmatprep.mubr.f32.mxu0 0.0
        %597 = vmatmul.mubr.f32.gmra.mrb[0].mxu0 %v520
        %v598 = vpop.f32.mrb[0].mxu0
        %v599 = vadd.f32 0.0, %v598
        %v600 = vpop.f32.mrb[0].mxu0
        %601 = vdwg.mxu0
        %v603 = vsel %vm512, %v503, 0
        %v606 = vsel %vm512, %v504, 0
        %v609 = vsel %vm512, %v505, 0
        %611 = vmatprep.subr.mxu0 0.0
        %612 = vmatpush1.msra.mxu0 %v511
        %613 = vmatprep.subr.mxu0 0.0
        %614 = vmatpush1.msra.mxu0 0.0
        %615 = vmatprep.subr.mxu0 0.0
        %616 = vmatpush1.msra.mxu0 0.0
        %617 = vmatprep.subr.mxu0 0.0
        %618 = vmatpush1.msra.mxu0 0.0
        %619 = vmatprep.subr.mxu0 0.0
        %620 = vmatpush1.msra.mxu0 0.0
        %621 = vmatprep.subr.mxu0 0.0
        %622 = vmatpush1.msra.mxu0 0.0
        %623 = vmatprep.subr.mxu0 0.0
        %624 = vmatpush1.msra.mxu0 0.0
        %625 = vmatprep.subr.mxu0 0.0
        %626 = vmatpush1.msra.mxu0 0.0
        %627 = vmatprep.subr.mxu0 0.0
        %628 = vmatpush1.msra.mxu0 0.0
        %629 = vmatprep.subr.mxu0 0.0
        %630 = vmatpush1.msra.mxu0 0.0
        %631 = vmatprep.subr.mxu0 0.0
        %632 = vmatpush1.msra.mxu0 0.0
        %633 = vmatprep.subr.mxu0 0.0
        %634 = vmatpush1.msra.mxu0 0.0
        %635 = vmatprep.subr.mxu0 0.0
        %636 = vmatpush1.msra.mxu0 0.0
        %637 = vmatprep.subr.mxu0 0.0
        %638 = vmatpush1.msra.mxu0 0.0
        %639 = vmatprep.subr.mxu0 0.0
        %640 = vmatpush1.msra.mxu0 0.0
        %641 = vmatprep.subr.mxu0 0.0
        %642 = vmatpush1.msra.mxu0 0.0
        %643 = vmatprep.subr.mxu0 0.0
        %644 = vmatpush1.msra.mxu0 0.0
        %645 = vmatprep.subr.mxu0 0.0
        %646 = vmatpush1.msra.mxu0 0.0
        %647 = vmatprep.subr.mxu0 0.0
        %648 = vmatpush1.msra.mxu0 0.0
        %649 = vmatprep.subr.mxu0 0.0
        %650 = vmatpush1.msra.mxu0 0.0
        %651 = vmatprep.subr.mxu0 0.0
        %652 = vmatpush1.msra.mxu0 0.0
        %653 = vmatprep.subr.mxu0 0.0
        %654 = vmatpush1.msra.mxu0 0.0
        %655 = vmatprep.subr.mxu0 0.0
        %656 = vmatpush1.msra.mxu0 0.0
        %657 = vmatprep.subr.mxu0 0.0
        %658 = vmatpush1.msra.mxu0 0.0
        %659 = vmatprep.subr.mxu0 0.0
        %660 = vmatpush1.msra.mxu0 0.0
        %661 = vmatprep.subr.mxu0 0.0
        %662 = vmatpush1.msra.mxu0 0.0
        %663 = vmatprep.subr.mxu0 0.0
        %664 = vmatpush1.msra.mxu0 0.0
        %665 = vmatprep.subr.mxu0 0.0
        %666 = vmatpush1.msra.mxu0 0.0
        %667 = vmatprep.subr.mxu0 0.0
        %668 = vmatpush1.msra.mxu0 0.0
        %669 = vmatprep.subr.mxu0 0.0
        %670 = vmatpush1.msra.mxu0 0.0
        %671 = vmatprep.subr.mxu0 0.0
        %672 = vmatpush1.msra.mxu0 0.0
        %673 = vmatprep.subr.mxu0 0.0
        %674 = vmatpush1.msra.mxu0 0.0
        %675 = vmatprep.mubr.f32.mxu0 0.0
        %676 = vmatmul.mubr.f32.gmra.mrb[0].mxu0 %v603
        %v677 = vpop.f32.mrb[0].mxu0
        %v678 = vadd.f32 %v589, %v677
        %v679 = vpop.f32.mrb[0].mxu0
        %680 = vmatprep.mubr.f32.mxu0 0.0
        %681 = vmatmul.mubr.f32.gmra.mrb[0].mxu0 %v606
        %v682 = vpop.f32.mrb[0].mxu0
        %v683 = vadd.f32 %v594, %v682
        %v684 = vpop.f32.mrb[0].mxu0
        %685 = vmatprep.mubr.f32.mxu0 0.0
        %686 = vmatmul.mubr.f32.gmra.mrb[0].mxu0 %v609
        %v687 = vpop.f32.mrb[0].mxu0
        %v688 = vadd.f32 %v599, %v687
        %v689 = vpop.f32.mrb[0].mxu0
        %690 = vdwg.mxu0
        %v691 = vadd.f32 %v683, 0.0
        %v692 = vadd.f32 %v688, 0.0
        %v693 = vmul.f32 %v499, %v678
        %694 = vmatprep.subr.mxu0 0.0
        %695 = vmatpush1.msra.mxu0 %v678
        %696 = vmatprep.subr.mxu0 0.0
        %697 = vmatpush1.msra.mxu0 0.0
        %698 = vmatprep.subr.mxu0 0.0
        %699 = vmatpush1.msra.mxu0 0.0
        %700 = vmatprep.subr.mxu0 0.0
        %701 = vmatpush1.msra.mxu0 0.0
        %702 = vmatprep.subr.mxu0 0.0
        %703 = vmatpush1.msra.mxu0 0.0
        %704 = vmatprep.subr.mxu0 0.0
        %705 = vmatpush1.msra.mxu0 0.0
        %706 = vmatprep.subr.mxu0 0.0
        %707 = vmatpush1.msra.mxu0 0.0
        %708 = vmatprep.subr.mxu0 0.0
        %709 = vmatpush1.msra.mxu0 0.0
        %710 = vmatprep.subr.mxu0 0.0
        %711 = vmatpush1.msra.mxu0 0.0
        %712 = vmatprep.subr.mxu0 0.0
        %713 = vmatpush1.msra.mxu0 0.0
        %714 = vmatprep.subr.mxu0 0.0
        %715 = vmatpush1.msra.mxu0 0.0
        %716 = vmatprep.subr.mxu0 0.0
        %717 = vmatpush1.msra.mxu0 0.0
        %718 = vmatprep.subr.mxu0 0.0
        %719 = vmatpush1.msra.mxu0 0.0
        %720 = vmatprep.subr.mxu0 0.0
        %721 = vmatpush1.msra.mxu0 0.0
        %722 = vmatprep.subr.mxu0 0.0
        %723 = vmatpush1.msra.mxu0 0.0
        %724 = vmatprep.subr.mxu0 0.0
        %725 = vmatpush1.msra.mxu0 0.0
        %726 = vmatprep.subr.mxu0 0.0
        %727 = vmatpush1.msra.mxu0 0.0
        %728 = vmatprep.subr.mxu0 0.0
        %729 = vmatpush1.msra.mxu0 0.0
        %730 = vmatprep.subr.mxu0 0.0
        %731 = vmatpush1.msra.mxu0 0.0
        %732 = vmatprep.subr.mxu0 0.0
        %733 = vmatpush1.msra.mxu0 0.0
        %734 = vmatprep.subr.mxu0 0.0
        %735 = vmatpush1.msra.mxu0 0.0
        %736 = vmatprep.subr.mxu0 0.0
        %737 = vmatpush1.msra.mxu0 0.0
        %738 = vmatprep.subr.mxu0 0.0
        %739 = vmatpush1.msra.mxu0 0.0
        %740 = vmatprep.subr.mxu0 0.0
        %741 = vmatpush1.msra.mxu0 0.0
        %742 = vmatprep.subr.mxu0 0.0
        %743 = vmatpush1.msra.mxu0 0.0
        %744 = vmatprep.subr.mxu0 0.0
        %745 = vmatpush1.msra.mxu0 0.0
        %746 = vmatprep.subr.mxu0 0.0
        %747 = vmatpush1.msra.mxu0 0.0
        %748 = vmatprep.subr.mxu0 0.0
        %749 = vmatpush1.msra.mxu0 0.0
        %750 = vmatprep.subr.mxu0 0.0
        %751 = vmatpush1.msra.mxu0 0.0
        %752 = vmatprep.subr.mxu0 0.0
        %753 = vmatpush1.msra.mxu0 0.0
        %754 = vmatprep.subr.mxu0 0.0
        %755 = vmatpush1.msra.mxu0 0.0
        %756 = vmatprep.subr.mxu0 0.0
        %757 = vmatpush1.msra.mxu0 0.0
        %758 = vmatprep.mubr.f32.mxu0 0.0
        %759 = vmatmul.mubr.f32.gmra.mrb[0].mxu0 %v514
        %v760 = vpop.f32.mrb[0].mxu0
        %v761 = vadd.f32 0.0, %v760
        %v762 = vpop.f32.mrb[0].mxu0
        %763 = vmatprep.mubr.f32.mxu0 0.0
        %764 = vmatmul.mubr.f32.gmra.mrb[0].mxu0 %v517
        %v765 = vpop.f32.mrb[0].mxu0
        %v766 = vadd.f32 0.0, %v765
        %v767 = vpop.f32.mrb[0].mxu0
        %768 = vmatprep.mubr.f32.mxu0 0.0
        %769 = vmatmul.mubr.f32.gmra.mrb[0].mxu0 %v520
        %v770 = vpop.f32.mrb[0].mxu0
        %v771 = vadd.f32 0.0, %v770
        %v772 = vpop.f32.mrb[0].mxu0
        %773 = vdwg.mxu0
        %774 = vmatprep.subr.mxu0 0.0
        %775 = vmatpush1.msra.mxu0 %v693
        %776 = vmatprep.subr.mxu0 0.0
        %777 = vmatpush1.msra.mxu0 0.0
        %778 = vmatprep.subr.mxu0 0.0
        %779 = vmatpush1.msra.mxu0 0.0
        %780 = vmatprep.subr.mxu0 0.0
        %781 = vmatpush1.msra.mxu0 0.0
        %782 = vmatprep.subr.mxu0 0.0
        %783 = vmatpush1.msra.mxu0 0.0
        %784 = vmatprep.subr.mxu0 0.0
        %785 = vmatpush1.msra.mxu0 0.0
        %786 = vmatprep.subr.mxu0 0.0
        %787 = vmatpush1.msra.mxu0 0.0
        %788 = vmatprep.subr.mxu0 0.0
        %789 = vmatpush1.msra.mxu0 0.0
        %790 = vmatprep.subr.mxu0 0.0
        %791 = vmatpush1.msra.mxu0 0.0
        %792 = vmatprep.subr.mxu0 0.0
        %793 = vmatpush1.msra.mxu0 0.0
        %794 = vmatprep.subr.mxu0 0.0
        %795 = vmatpush1.msra.mxu0 0.0
        %796 = vmatprep.subr.mxu0 0.0
        %797 = vmatpush1.msra.mxu0 0.0
        %798 = vmatprep.subr.mxu0 0.0
        %799 = vmatpush1.msra.mxu0 0.0
        %800 = vmatprep.subr.mxu0 0.0
        %801 = vmatpush1.msra.mxu0 0.0
        %802 = vmatprep.subr.mxu0 0.0
        %803 = vmatpush1.msra.mxu0 0.0
        %804 = vmatprep.subr.mxu0 0.0
        %805 = vmatpush1.msra.mxu0 0.0
        %806 = vmatprep.subr.mxu0 0.0
        %807 = vmatpush1.msra.mxu0 0.0
        %808 = vmatprep.subr.mxu0 0.0
        %809 = vmatpush1.msra.mxu0 0.0
        %810 = vmatprep.subr.mxu0 0.0
        %811 = vmatpush1.msra.mxu0 0.0
        %812 = vmatprep.subr.mxu0 0.0
        %813 = vmatpush1.msra.mxu0 0.0
        %814 = vmatprep.subr.mxu0 0.0
        %815 = vmatpush1.msra.mxu0 0.0
        %816 = vmatprep.subr.mxu0 0.0
        %817 = vmatpush1.msra.mxu0 0.0
        %818 = vmatprep.subr.mxu0 0.0
        %819 = vmatpush1.msra.mxu0 0.0
        %820 = vmatprep.subr.mxu0 0.0
        %821 = vmatpush1.msra.mxu0 0.0
        %822 = vmatprep.subr.mxu0 0.0
        %823 = vmatpush1.msra.mxu0 0.0
        %824 = vmatprep.subr.mxu0 0.0
        %825 = vmatpush1.msra.mxu0 0.0
        %826 = vmatprep.subr.mxu0 0.0
        %827 = vmatpush1.msra.mxu0 0.0
        %828 = vmatprep.subr.mxu0 0.0
        %829 = vmatpush1.msra.mxu0 0.0
        %830 = vmatprep.subr.mxu0 0.0
        %831 = vmatpush1.msra.mxu0 0.0
        %832 = vmatprep.subr.mxu0 0.0
        %833 = vmatpush1.msra.mxu0 0.0
        %834 = vmatprep.subr.mxu0 0.0
        %835 = vmatpush1.msra.mxu0 0.0
        %836 = vmatprep.subr.mxu0 0.0
        %837 = vmatpush1.msra.mxu0 0.0
        %838 = vmatprep.mubr.f32.mxu0 0.0
        %839 = vmatmul.mubr.f32.gmra.mrb[0].mxu0 %v603
        %v840 = vpop.f32.mrb[0].mxu0
        %v841 = vadd.f32 %v761, %v840
        %v842 = vpop.f32.mrb[0].mxu0
        %843 = vmatprep.mubr.f32.mxu0 0.0
        %844 = vmatmul.mubr.f32.gmra.mrb[0].mxu0 %v606
        %v845 = vpop.f32.mrb[0].mxu0
        %v846 = vadd.f32 %v766, %v845
        %v847 = vpop.f32.mrb[0].mxu0
        %848 = vmatprep.mubr.f32.mxu0 0.0
        %849 = vmatmul.mubr.f32.gmra.mrb[0].mxu0 %v609
        %v850 = vpop.f32.mrb[0].mxu0
        %v851 = vadd.f32 %v771, %v850
        %v852 = vpop.f32.mrb[0].mxu0
        %853 = vdwg.mxu0
        %v854 = vadd.f32 %v691, %v846
        %v855 = vadd.f32 %v692, %v851
        %v856 = vmul.f32 %v499, %v841
        %857 = vmatprep.subr.mxu0 0.0
        %858 = vmatpush1.msra.mxu0 %v841
        %859 = vmatprep.subr.mxu0 0.0
        %860 = vmatpush1.msra.mxu0 0.0
        %861 = vmatprep.subr.mxu0 0.0
        %862 = vmatpush1.msra.mxu0 0.0
        %863 = vmatprep.subr.mxu0 0.0
        %864 = vmatpush1.msra.mxu0 0.0
        %865 = vmatprep.subr.mxu0 0.0
        %866 = vmatpush1.msra.mxu0 0.0
        %867 = vmatprep.subr.mxu0 0.0
        %868 = vmatpush1.msra.mxu0 0.0
        %869 = vmatprep.subr.mxu0 0.0
        %870 = vmatpush1.msra.mxu0 0.0
        %871 = vmatprep.subr.mxu0 0.0
        %872 = vmatpush1.msra.mxu0 0.0
        %873 = vmatprep.subr.mxu0 0.0
        %874 = vmatpush1.msra.mxu0 0.0
        %875 = vmatprep.subr.mxu0 0.0
        %876 = vmatpush1.msra.mxu0 0.0
        %877 = vmatprep.subr.mxu0 0.0
        %878 = vmatpush1.msra.mxu0 0.0
        %879 = vmatprep.subr.mxu0 0.0
        %880 = vmatpush1.msra.mxu0 0.0
        %881 = vmatprep.subr.mxu0 0.0
        %882 = vmatpush1.msra.mxu0 0.0
        %883 = vmatprep.subr.mxu0 0.0
        %884 = vmatpush1.msra.mxu0 0.0
        %885 = vmatprep.subr.mxu0 0.0
        %886 = vmatpush1.msra.mxu0 0.0
        %887 = vmatprep.subr.mxu0 0.0
        %888 = vmatpush1.msra.mxu0 0.0
        %889 = vmatprep.subr.mxu0 0.0
        %890 = vmatpush1.msra.mxu0 0.0
        %891 = vmatprep.subr.mxu0 0.0
        %892 = vmatpush1.msra.mxu0 0.0
        %893 = vmatprep.subr.mxu0 0.0
        %894 = vmatpush1.msra.mxu0 0.0
        %895 = vmatprep.subr.mxu0 0.0
        %896 = vmatpush1.msra.mxu0 0.0
        %897 = vmatprep.subr.mxu0 0.0
        %898 = vmatpush1.msra.mxu0 0.0
        %899 = vmatprep.subr.mxu0 0.0
        %900 = vmatpush1.msra.mxu0 0.0
        %901 = vmatprep.subr.mxu0 0.0
        %902 = vmatpush1.msra.mxu0 0.0
        %903 = vmatprep.subr.mxu0 0.0
        %904 = vmatpush1.msra.mxu0 0.0
        %905 = vmatprep.subr.mxu0 0.0
        %906 = vmatpush1.msra.mxu0 0.0
        %907 = vmatprep.subr.mxu0 0.0
        %908 = vmatpush1.msra.mxu0 0.0
        %909 = vmatprep.subr.mxu0 0.0
        %910 = vmatpush1.msra.mxu0 0.0
        %911 = vmatprep.subr.mxu0 0.0
        %912 = vmatpush1.msra.mxu0 0.0
        %913 = vmatprep.subr.mxu0 0.0
        %914 = vmatpush1.msra.mxu0 0.0
        %915 = vmatprep.subr.mxu0 0.0
        %916 = vmatpush1.msra.mxu0 0.0
        %917 = vmatprep.subr.mxu0 0.0
        %918 = vmatpush1.msra.mxu0 0.0
        %919 = vmatprep.subr.mxu0 0.0
        %920 = vmatpush1.msra.mxu0 0.0
        %921 = vmatprep.mubr.f32.mxu0 0.0
        %922 = vmatmul.mubr.f32.gmra.mrb[0].mxu0 %v514
        %v923 = vpop.f32.mrb[0].mxu0
        %v924 = vadd.f32 0.0, %v923
        %v925 = vpop.f32.mrb[0].mxu0
        %926 = vmatprep.mubr.f32.mxu0 0.0
        %927 = vmatmul.mubr.f32.gmra.mrb[0].mxu0 %v517
        %v928 = vpop.f32.mrb[0].mxu0
        %v929 = vadd.f32 0.0, %v928
        %v930 = vpop.f32.mrb[0].mxu0
        %931 = vmatprep.mubr.f32.mxu0 0.0
        %932 = vmatmul.mubr.f32.gmra.mrb[0].mxu0 %v520
        %v933 = vpop.f32.mrb[0].mxu0
        %v934 = vadd.f32 0.0, %v933
        %v935 = vpop.f32.mrb[0].mxu0
        %936 = vdwg.mxu0
        %937 = vmatprep.subr.mxu0 0.0
        %938 = vmatpush1.msra.mxu0 %v856
        %939 = vmatprep.subr.mxu0 0.0
        %940 = vmatpush1.msra.mxu0 0.0
        %941 = vmatprep.subr.mxu0 0.0
        %942 = vmatpush1.msra.mxu0 0.0
        %943 = vmatprep.subr.mxu0 0.0
        %944 = vmatpush1.msra.mxu0 0.0
        %945 = vmatprep.subr.mxu0 0.0
        %946 = vmatpush1.msra.mxu0 0.0
        %947 = vmatprep.subr.mxu0 0.0
        %948 = vmatpush1.msra.mxu0 0.0
        %949 = vmatprep.subr.mxu0 0.0
        %950 = vmatpush1.msra.mxu0 0.0
        %951 = vmatprep.subr.mxu0 0.0
        %952 = vmatpush1.msra.mxu0 0.0
        %953 = vmatprep.subr.mxu0 0.0
        %954 = vmatpush1.msra.mxu0 0.0
        %955 = vmatprep.subr.mxu0 0.0
        %956 = vmatpush1.msra.mxu0 0.0
        %957 = vmatprep.subr.mxu0 0.0
        %958 = vmatpush1.msra.mxu0 0.0
        %959 = vmatprep.subr.mxu0 0.0
        %960 = vmatpush1.msra.mxu0 0.0
        %961 = vmatprep.subr.mxu0 0.0
        %962 = vmatpush1.msra.mxu0 0.0
        %963 = vmatprep.subr.mxu0 0.0
        %964 = vmatpush1.msra.mxu0 0.0
        %965 = vmatprep.subr.mxu0 0.0
        %966 = vmatpush1.msra.mxu0 0.0
        %967 = vmatprep.subr.mxu0 0.0
        %968 = vmatpush1.msra.mxu0 0.0
        %969 = vmatprep.subr.mxu0 0.0
        %970 = vmatpush1.msra.mxu0 0.0
        %971 = vmatprep.subr.mxu0 0.0
        %972 = vmatpush1.msra.mxu0 0.0
        %973 = vmatprep.subr.mxu0 0.0
        %974 = vmatpush1.msra.mxu0 0.0
        %975 = vmatprep.subr.mxu0 0.0
        %976 = vmatpush1.msra.mxu0 0.0
        %977 = vmatprep.subr.mxu0 0.0
        %978 = vmatpush1.msra.mxu0 0.0
        %979 = vmatprep.subr.mxu0 0.0
        %980 = vmatpush1.msra.mxu0 0.0
        %981 = vmatprep.subr.mxu0 0.0
        %982 = vmatpush1.msra.mxu0 0.0
        %983 = vmatprep.subr.mxu0 0.0
        %984 = vmatpush1.msra.mxu0 0.0
        %985 = vmatprep.subr.mxu0 0.0
        %986 = vmatpush1.msra.mxu0 0.0
        %987 = vmatprep.subr.mxu0 0.0
        %988 = vmatpush1.msra.mxu0 0.0
        %989 = vmatprep.subr.mxu0 0.0
        %990 = vmatpush1.msra.mxu0 0.0
        %991 = vmatprep.subr.mxu0 0.0
        %992 = vmatpush1.msra.mxu0 0.0
        %993 = vmatprep.subr.mxu0 0.0
        %994 = vmatpush1.msra.mxu0 0.0
        %995 = vmatprep.subr.mxu0 0.0
        %996 = vmatpush1.msra.mxu0 0.0
        %997 = vmatprep.subr.mxu0 0.0
        %998 = vmatpush1.msra.mxu0 0.0
        %999 = vmatprep.subr.mxu0 0.0
        %1000 = vmatpush1.msra.mxu0 0.0
        %1001 = vmatprep.mubr.f32.mxu0 0.0
        %1002 = vmatmul.mubr.f32.gmra.mrb[0].mxu0 %v603
        %v1003 = vpop.f32.mrb[0].mxu0
        %v1004 = vadd.f32 %v924, %v1003
        %v1005 = vpop.f32.mrb[0].mxu0
        %1006 = vmatprep.mubr.f32.mxu0 0.0
        %1007 = vmatmul.mubr.f32.gmra.mrb[0].mxu0 %v606
        %v1008 = vpop.f32.mrb[0].mxu0
        %v1009 = vadd.f32 %v929, %v1008
        %v1010 = vpop.f32.mrb[0].mxu0
        %1011 = vmatprep.mubr.f32.mxu0 0.0
        %1012 = vmatmul.mubr.f32.gmra.mrb[0].mxu0 %v609
        %v1013 = vpop.f32.mrb[0].mxu0
        %v1014 = vadd.f32 %v934, %v1013
        %v1015 = vpop.f32.mrb[0].mxu0
        %1016 = vdwg.mxu0
        %v1017 = vadd.f32 %v854, %v1009
        %v1018 = vadd.f32 %v855, %v1014
        %v1019 = vmul.f32 %v499, %v1004
        %1020 = vmatprep.subr.mxu0 0.0
        %1021 = vmatpush1.msra.mxu0 %v1004
        %1022 = vmatprep.subr.mxu0 0.0
        %1023 = vmatpush1.msra.mxu0 0.0
        %1024 = vmatprep.subr.mxu0 0.0
        %1025 = vmatpush1.msra.mxu0 0.0
        %1026 = vmatprep.subr.mxu0 0.0
        %1027 = vmatpush1.msra.mxu0 0.0
        %1028 = vmatprep.subr.mxu0 0.0
        %1029 = vmatpush1.msra.mxu0 0.0
        %1030 = vmatprep.subr.mxu0 0.0
        %1031 = vmatpush1.msra.mxu0 0.0
        %1032 = vmatprep.subr.mxu0 0.0
        %1033 = vmatpush1.msra.mxu0 0.0
        %1034 = vmatprep.subr.mxu0 0.0
        %1035 = vmatpush1.msra.mxu0 0.0
        %1036 = vmatprep.subr.mxu0 0.0
        %1037 = vmatpush1.msra.mxu0 0.0
        %1038 = vmatprep.subr.mxu0 0.0
        %1039 = vmatpush1.msra.mxu0 0.0
        %1040 = vmatprep.subr.mxu0 0.0
        %1041 = vmatpush1.msra.mxu0 0.0
        %1042 = vmatprep.subr.mxu0 0.0
        %1043 = vmatpush1.msra.mxu0 0.0
        %1044 = vmatprep.subr.mxu0 0.0
        %1045 = vmatpush1.msra.mxu0 0.0
        %1046 = vmatprep.subr.mxu0 0.0
        %1047 = vmatpush1.msra.mxu0 0.0
        %1048 = vmatprep.subr.mxu0 0.0
        %1049 = vmatpush1.msra.mxu0 0.0
        %1050 = vmatprep.subr.mxu0 0.0
        %1051 = vmatpush1.msra.mxu0 0.0
        %1052 = vmatprep.subr.mxu0 0.0
        %1053 = vmatpush1.msra.mxu0 0.0
        %1054 = vmatprep.subr.mxu0 0.0
        %1055 = vmatpush1.msra.mxu0 0.0
        %1056 = vmatprep.subr.mxu0 0.0
        %1057 = vmatpush1.msra.mxu0 0.0
        %1058 = vmatprep.subr.mxu0 0.0
        %1059 = vmatpush1.msra.mxu0 0.0
        %1060 = vmatprep.subr.mxu0 0.0
        %1061 = vmatpush1.msra.mxu0 0.0
        %1062 = vmatprep.subr.mxu0 0.0
        %1063 = vmatpush1.msra.mxu0 0.0
        %1064 = vmatprep.subr.mxu0 0.0
        %1065 = vmatpush1.msra.mxu0 0.0
        %1066 = vmatprep.subr.mxu0 0.0
        %1067 = vmatpush1.msra.mxu0 0.0
        %1068 = vmatprep.subr.mxu0 0.0
        %1069 = vmatpush1.msra.mxu0 0.0
        %1070 = vmatprep.subr.mxu0 0.0
        %1071 = vmatpush1.msra.mxu0 0.0
        %1072 = vmatprep.subr.mxu0 0.0
        %1073 = vmatpush1.msra.mxu0 0.0
        %1074 = vmatprep.subr.mxu0 0.0
        %1075 = vmatpush1.msra.mxu0 0.0
        %1076 = vmatprep.subr.mxu0 0.0
        %1077 = vmatpush1.msra.mxu0 0.0
        %1078 = vmatprep.subr.mxu0 0.0
        %1079 = vmatpush1.msra.mxu0 0.0
        %1080 = vmatprep.subr.mxu0 0.0
        %1081 = vmatpush1.msra.mxu0 0.0
        %1082 = vmatprep.subr.mxu0 0.0
        %1083 = vmatpush1.msra.mxu0 0.0
        %1084 = vmatprep.mubr.f32.mxu0 0.0
        %1085 = vmatmul.mubr.f32.gmra.mrb[0].mxu0 %v514
        %v1086 = vpop.f32.mrb[0].mxu0
        %v1087 = vpop.f32.mrb[0].mxu0
        %1088 = vmatprep.mubr.f32.mxu0 0.0
        %1089 = vmatmul.mubr.f32.gmra.mrb[0].mxu0 %v517
        %v1090 = vpop.f32.mrb[0].mxu0
        %v1091 = vadd.f32 0.0, %v1090
        %v1092 = vpop.f32.mrb[0].mxu0
        %1093 = vmatprep.mubr.f32.mxu0 0.0
        %1094 = vmatmul.mubr.f32.gmra.mrb[0].mxu0 %v520
        %v1095 = vpop.f32.mrb[0].mxu0
        %v1096 = vadd.f32 0.0, %v1095
        %v1097 = vpop.f32.mrb[0].mxu0
        %1098 = vdwg.mxu0
        %1099 = vmatprep.subr.mxu0 0.0
        %1100 = vmatpush1.msra.mxu0 %v1019
        %1101 = vmatprep.subr.mxu0 0.0
        %1102 = vmatpush1.msra.mxu0 0.0
        %1103 = vmatprep.subr.mxu0 0.0
        %1104 = vmatpush1.msra.mxu0 0.0
        %1105 = vmatprep.subr.mxu0 0.0
        %1106 = vmatpush1.msra.mxu0 0.0
        %1107 = vmatprep.subr.mxu0 0.0
        %1108 = vmatpush1.msra.mxu0 0.0
        %1109 = vmatprep.subr.mxu0 0.0
        %1110 = vmatpush1.msra.mxu0 0.0
        %1111 = vmatprep.subr.mxu0 0.0
        %1112 = vmatpush1.msra.mxu0 0.0
        %1113 = vmatprep.subr.mxu0 0.0
        %1114 = vmatpush1.msra.mxu0 0.0
        %1115 = vmatprep.subr.mxu0 0.0
        %1116 = vmatpush1.msra.mxu0 0.0
        %1117 = vmatprep.subr.mxu0 0.0
        %1118 = vmatpush1.msra.mxu0 0.0
        %1119 = vmatprep.subr.mxu0 0.0
        %1120 = vmatpush1.msra.mxu0 0.0
        %1121 = vmatprep.subr.mxu0 0.0
        %1122 = vmatpush1.msra.mxu0 0.0
        %1123 = vmatprep.subr.mxu0 0.0
        %1124 = vmatpush1.msra.mxu0 0.0
        %1125 = vmatprep.subr.mxu0 0.0
        %1126 = vmatpush1.msra.mxu0 0.0
        %1127 = vmatprep.subr.mxu0 0.0
        %1128 = vmatpush1.msra.mxu0 0.0
        %1129 = vmatprep.subr.mxu0 0.0
        %1130 = vmatpush1.msra.mxu0 0.0
        %1131 = vmatprep.subr.mxu0 0.0
        %1132 = vmatpush1.msra.mxu0 0.0
        %1133 = vmatprep.subr.mxu0 0.0
        %1134 = vmatpush1.msra.mxu0 0.0
        %1135 = vmatprep.subr.mxu0 0.0
        %1136 = vmatpush1.msra.mxu0 0.0
        %1137 = vmatprep.subr.mxu0 0.0
        %1138 = vmatpush1.msra.mxu0 0.0
        %1139 = vmatprep.subr.mxu0 0.0
        %1140 = vmatpush1.msra.mxu0 0.0
        %1141 = vmatprep.subr.mxu0 0.0
        %1142 = vmatpush1.msra.mxu0 0.0
        %1143 = vmatprep.subr.mxu0 0.0
        %1144 = vmatpush1.msra.mxu0 0.0
        %1145 = vmatprep.subr.mxu0 0.0
        %1146 = vmatpush1.msra.mxu0 0.0
        %1147 = vmatprep.subr.mxu0 0.0
        %1148 = vmatpush1.msra.mxu0 0.0
        %1149 = vmatprep.subr.mxu0 0.0
        %1150 = vmatpush1.msra.mxu0 0.0
        %1151 = vmatprep.subr.mxu0 0.0
        %1152 = vmatpush1.msra.mxu0 0.0
        %1153 = vmatprep.subr.mxu0 0.0
        %1154 = vmatpush1.msra.mxu0 0.0
        %1155 = vmatprep.subr.mxu0 0.0
        %1156 = vmatpush1.msra.mxu0 0.0
        %1157 = vmatprep.subr.mxu0 0.0
        %1158 = vmatpush1.msra.mxu0 0.0
        %1159 = vmatprep.subr.mxu0 0.0
        %1160 = vmatpush1.msra.mxu0 0.0
        %1161 = vmatprep.subr.mxu0 0.0
        %1162 = vmatpush1.msra.mxu0 0.0
        %1163 = vmatprep.mubr.f32.mxu0 0.0
        %1164 = vmatmul.mubr.f32.gmra.mrb[0].mxu0 %v603
        %v1165 = vpop.f32.mrb[0].mxu0
        %v1166 = vpop.f32.mrb[0].mxu0
        %1167 = vmatprep.mubr.f32.mxu0 0.0
        %1168 = vmatmul.mubr.f32.gmra.mrb[0].mxu0 %v606
        %v1169 = vpop.f32.mrb[0].mxu0
        %v1170 = vadd.f32 %v1091, %v1169
        %v1171 = vpop.f32.mrb[0].mxu0
        %1172 = vmatprep.mubr.f32.mxu0 0.0
        %1173 = vmatmul.mubr.f32.gmra.mrb[0].mxu0 %v609
        %v1174 = vpop.f32.mrb[0].mxu0
        %v1175 = vadd.f32 %v1096, %v1174
        %v1176 = vpop.f32.mrb[0].mxu0
        %1177 = vdwg.mxu0
        %v1178 = vadd.f32 %v1017, %v1170
        %v1179 = vadd.f32 %v1018, %v1175
        %vm1180 = vcmp.gt.f32.partialorder %v1178, 0.0
        %vm1181 = vcmp.gt.f32.partialorder %v1179, 0.0
        %v1182 = vsel %vm1180, %v1178, 1e-05
        %v1183 = vsel %vm1181, %v1179, 1e-05
        %vm1184 = vcmp.lt.f32.partialorder %v1182, 1.0
        %vm1185 = vcmp.lt.f32.partialorder %v1183, 1.0
        %v1186 = vsel %vm1184, %v1182, 0.99999
        %v1187 = vsel %vm1185, %v1183, 0.99999
        %1188 = vst [vmem:[%s377] sm:$0xff] %v1186
        %1189 = vst [vmem:[%s377 + $0x8] sm:$0xff] %v1187
        %s1190 = sand.u32 %s147, 1
        %s1191 = scalar_lea.sflag [#allocation5], %s1190
        %s1192 = sand.u32 %s147, 1
        %s1193 = smul.addr %s1192, 16
        %s1194 = scalar_lea.vmem [#allocation6], %s1193
        // Predicated region
        $region82: #{tpu_custom_call.1} parent=72 // pred_check
          %p1195 = pneg %p157
        $region83: #{tpu_custom_call.1} parent=72 // pred_check_branch
          %1197 = sbr.rel (%p1195) target = $region85
        $region84: #{tpu_custom_call.1} parent=72 // pred_region
          %s1199 = ssub.s32 256, 256
          %1200 = vsyncadd %s1191, %s1199
          %s1201 = smul.addr %s25, 4
          %s1202 = sadd.s32 %s26, %s1201
          %s1203 = smul.addr %s1202, 128
          %s1204 = scalar_lea.hbm %s4, %s1203
          %s1205 = sshll.u32 %s1194, 4
          %s1206 = int_to_ptr.vmem [resolvable:$true] %s1205
          %1211 = dma.vmem_to_hbm [thread:$0]  %s1206, 256, %s1204, %s1191, 128, 256, 8
        $region85: #{tpu_custom_call.1} parent=72 // pred_fallthru
          _
      $region73: #{tpu_custom_call.1} parent=5 // pred_fallthru
        _
      %p1212 = scmp.le.s32.totalorder 2, %s16
      // Predicated region
      $region86: #{tpu_custom_call.1} parent=5 // pred_check
        %p1213 = pneg %p1212
      $region87: #{tpu_custom_call.1} parent=5 // pred_check_branch
        %1215 = sbr.rel (%p1213) target = $region89
      $region88: #{tpu_custom_call.1} parent=5 // pred_region
        %s1216 = ssub.s32 %s16, 2
        // Predicated region
        $region90: #{tpu_custom_call.1} parent=88 // pred_check
          %p1217 = pneg %p163
        $region91: #{tpu_custom_call.1} parent=88 // pred_check_branch
          %1219 = sbr.rel (%p1217) target = $region93
        $region92: #{tpu_custom_call.1} parent=88 // pred_region
          %s1220 = sand.u32 %s148, 1
          %s1221 = scalar_lea.sflag [#allocation5], %s1220
          %s1222 = sand.u32 %s148, 1
          %s1223 = smul.addr %s1222, 16
          %s1224 = scalar_lea.vmem [#allocation6], %s1223
          %1225 = dma.done %s1221, 256
        $region93: #{tpu_custom_call.1} parent=88 // pred_fallthru
          _
      $region89: #{tpu_custom_call.1} parent=5 // pred_fallthru
        _
    $region6: #{tpu_custom_call.1} parent=1 // loop_footer
      %s20 = sadd.s32 1, %s16
    $region7: #{tpu_custom_call.1} parent=1 // loop_footer_branch
      %15 = sbr.rel target = $region3
    $region8: #{tpu_custom_call.1} parent=1 // loop_exit
      _
    %1226 = vsyncpa [#allocation4], 1
    %s1227 = scalar_lea.sflag [#allocation4], 1
    %1228 = vsyncpa %s1227, 1
    %1229 = vsyncpa [#allocation5], 1
    %s1230 = scalar_lea.sflag [#allocation5], 1
    %1231 = vsyncpa %s1230, 1

</llo_original>
